<compile_context>
chip_gen: v7x
topology: tpu7x:2x2x1
jax: 0.10.0
libtpu: 0.0.40
codegen_flags: <defaults>
</compile_context>

<pallas_src>
import functools

import jax
import jax.numpy as jnp
from jax.experimental import pallas as pl
from jax.experimental.pallas import tpu as pltpu


def _round_up(n, m):
    return -(-n // m) * m


def _vmem_capacity_bytes():
    """Physical VMEM per TensorCore (device-aware; conservative fallback)."""
    try:
        info = pltpu.get_tpu_info()
        cap = getattr(info, "vmem_capacity_bytes", None)
        if cap:
            return int(cap)
    except Exception:
        pass
    return 64 << 20          # conservative: v7x per-TC VMEM


def _k_alignment():
    """MXU contraction-dim alignment: 128 on v5e/v4-class, 256 on v6e/v7x-class."""
    try:
        kind = jax.devices()[0].device_kind.lower()
    except Exception:
        return 256
    for tag in ("v2", "v3", "v4", "v5"):
        if tag in kind:
            return 128
    return 256


def malconv_kernel(emb_ref, w_ref, ba_ref, bg_ref, o_ref, *, cp, lp_valid, needs_mask):
    """Grid: (batch blocks, L' tiles) — both 'parallel'.

    emb_ref: (tile_b, tile_lp, Kp) bf16 patches
    w_ref:   (Kp, 2*Cp) bf16 fused GLU conv weight   ba/bg: (1, Cp) f32 biases
    o_ref:   (1, tile_b, Cp) f32 partial max-over-time for this L' tile
    """
    tb, tl, kp = emb_ref.shape

    # One big MXU matmul: flatten (batch, time) into a single M dim.
    emb2 = emb_ref[...].reshape(tb * tl, kp)
    ag = jax.lax.dot_general(
        emb2, w_ref[...], (((1,), (0,)), ((), ())),
        preferred_element_type=jnp.float32)                 # (tb*tl, 2*cp) f32

    a = ag[:, :cp] + ba_ref[...]                            # lane-aligned slices
    g = ag[:, cp:] + bg_ref[...]
    glu = (a * jax.nn.sigmoid(g)).reshape(tb, tl, cp)       # F.glu(conv_out, dim=1)

    if needs_mask:
        t = pl.program_id(1)
        last = pl.num_programs(1) - 1

        @pl.when(t == last)
        def _():
            pos = jax.lax.broadcasted_iota(jnp.int32, (1, tl, 1), 1) + t * tl
            masked = jnp.where(pos < lp_valid, glu, -jnp.inf)
            o_ref[...] = jnp.max(masked, axis=1)[None]

        @pl.when(t < last)
        def _():
            o_ref[...] = jnp.max(glu, axis=1)[None]
    else:
        o_ref[...] = jnp.max(glu, axis=1)[None]


@functools.partial(jax.jit,
                   static_argnames=("window_size", "tile_lp", "tile_b", "compute_dtype"))
def malconv_plus_forward(x, params, *, window_size, tile_lp=256, tile_b=8,
                         compute_dtype=jnp.bfloat16):
    tok_tab = params["tok_embed"]     # (257, E)
    pos_tab = params["pos_embed"]     # (max_len, E)
    conv_w = params["conv_w"]         # (2C, E, W)
    conv_b = params["conv_b"]         # (2C,)
    fc_w = params["fc_w"]             # (1, C)
    fc_b = params["fc_b"]             # (1,)

    B, L = x.shape
    E = tok_tab.shape[1]
    W = window_size
    two_c = conv_w.shape[0]
    C = two_c // 2
    Lp = L // W                       # number of conv output positions
    K = W * E
    isz = jnp.dtype(compute_dtype).itemsize

    # --- padding of contraction / channel dims -----------------------------
    Kp = _round_up(K, 128)
    k_align = _k_alignment()
    if k_align > 128 and K > 128:     # avoid inflating tiny-K demo traffic
        Kp = _round_up(K, k_align)
    Cp = _round_up(C, 128)            # lane-aligned GLU halves / channels

    # --- batch tiling -------------------------------------------------------
    tile_b = max(1, min(tile_b, B))
    if tile_b < B:
        tile_b = _round_up(tile_b, 8)          # multi-block batch axis -> sublane aligned
    if tile_b >= B:
        tile_b = B                              # single batch block (block == full dim)
    Bp = _round_up(B, tile_b)

    # --- L' tiling, device-aware VMEM budget --------------------------------
    tile_lp = max(8, min(tile_lp, _round_up(Lp, 8)))
    tile_lp = _round_up(tile_lp, 8)

    def est_vmem(tb, tl):
        emb_blk = tb * tl * Kp * isz                 # double-buffered input block
        w_blk = Kp * (2 * Cp) * isz                  # fused GLU weight (double-buffered)
        f32_tmp = tb * tl * (2 * Cp) * 4             # matmul result + GLU temps
        out_blk = tb * Cp * 4
        bias = 2 * 8 * Cp * 4
        return 2 * emb_blk + 2 * w_blk + 2 * f32_tmp + 2 * out_blk + bias + (4 << 20)

    cap = _vmem_capacity_bytes()                     # 64 MiB (v7x) / 128 MiB (v5e,v6e)
    budget = max(24 << 20, cap - (8 << 20))
    while est_vmem(tile_b, tile_lp) > budget and tile_lp > 8:
        tile_lp = max(8, _round_up(tile_lp // 2, 8))
    vmem_limit = int(min(cap, max(32 << 20, est_vmem(tile_b, tile_lp))))

    Lpp = _round_up(Lp, tile_lp)                     # pad L' so the grid covers everything
    num_t = Lpp // tile_lp

    # --- glue (fused under this jit with the pallas_call) -------------------
    # Dropout(p=0.5) is identity in eval mode.
    # TODO(synk): training-mode dropout and a fully in-kernel token gather (257xE table
    # resident in VMEM, streaming raw token ids) are not implemented; gather + pos add +
    # bf16 cast + pad fuse into one HBM materialization under this jit.
    emb = (tok_tab[x] + pos_tab[:L][None, :, :]).astype(compute_dtype)    # (B, L, E)
    emb_p = emb[:, : Lp * W, :].reshape(B, Lp, K)                         # (B, L', W*E)
    emb_p = jnp.pad(emb_p, ((0, Bp - B), (0, Lpp - Lp), (0, Kp - K)))

    # Conv weight (2C, E, W) -> (W*E, 2C); flat index w*E + e matches the patch layout.
    wc = jnp.transpose(conv_w, (2, 1, 0)).reshape(K, two_c)
    w_fused = jnp.concatenate(
        [jnp.pad(wc[:, :C], ((0, Kp - K), (0, Cp - C))),
         jnp.pad(wc[:, C:], ((0, Kp - K), (0, Cp - C)))],
        axis=1).astype(compute_dtype)                                     # (Kp, 2*Cp)
    ba = jnp.pad(conv_b[:C], (0, Cp - C)).reshape(1, Cp).astype(jnp.float32)
    bg = jnp.pad(conv_b[C:], (0, Cp - C)).reshape(1, Cp).astype(jnp.float32)

    grid = (Bp // tile_b, num_t)
    kernel = functools.partial(malconv_kernel, cp=Cp, lp_valid=Lp,
                               needs_mask=(Lpp != Lp))

    part = pl.pallas_call(
        kernel,
        out_shape=jax.ShapeDtypeStruct((num_t, Bp, Cp), jnp.float32),
        grid=grid,
        in_specs=[
            pl.BlockSpec((tile_b, tile_lp, Kp), lambda b, t: (b, t, 0)),  # emb patches
            pl.BlockSpec((Kp, 2 * Cp), lambda b, t: (0, 0)),              # fused GLU weight
            pl.BlockSpec((1, Cp), lambda b, t: (0, 0)),                   # conv bias (a)
            pl.BlockSpec((1, Cp), lambda b, t: (0, 0)),                   # conv bias (gate)
        ],
        out_specs=pl.BlockSpec((1, tile_b, Cp), lambda b, t: (t, b, 0)),  # partial maxes
        compiler_params=pltpu.CompilerParams(
            dimension_semantics=("parallel", "parallel"),
            vmem_limit_bytes=vmem_limit),
    )(emb_p, w_fused, ba, bg)                                             # (num_t, Bp, Cp)

    # Final max over L' tiles + Linear(C, 1) in fused XLA (tiny; lane-dense kernel output).
    vals = jnp.max(part, axis=0)[:B, :C]                                  # (B, C)
    out = vals @ fc_w.T.astype(jnp.float32) + fc_b.astype(jnp.float32)    # (B, 1)
    return out[:, 0]                                                      # == fc(values).squeeze(1)


def reference_forward(x, params, *, window_size):
    """Plain JAX f32 reference mirroring the PyTorch forward (eval mode)."""
    tok_tab, pos_tab = params["tok_embed"], params["pos_embed"]
    conv_w, conv_b = params["conv_w"], params["conv_b"]
    fc_w, fc_b = params["fc_w"], params["fc_b"]
    B, L = x.shape
    emb = tok_tab[x] + pos_tab[:L][None]                 # (B, L, E)
    conv_in = jnp.transpose(emb, (0, 2, 1))              # (B, E, L)  (NCL)
    conv_out = jax.lax.conv_general_dilated(
        conv_in, conv_w, window_strides=(window_size,), padding="VALID",
        dimension_numbers=("NCH", "OIH", "NCH"),
    ) + conv_b[None, :, None]                            # (B, 2C, L')
    C = conv_out.shape[1] // 2
    glu = conv_out[:, :C] * jax.nn.sigmoid(conv_out[:, C:])
    vals = jnp.max(glu, axis=-1)                         # (B, C)
    return (vals @ fc_w.T + fc_b)[:, 0]                  # (B,)


if __name__ == "__main__":
    def make_params(key, embed_dim, max_len, out_channels, window_size):
        k = jax.random.split(key, 6)
        return {
            "tok_embed": jax.random.normal(k[0], (257, embed_dim), jnp.float32),
            "pos_embed": jax.random.normal(k[1], (max_len, embed_dim), jnp.float32),
            "conv_w": 0.1 * jax.random.normal(
                k[2], (2 * out_channels, embed_dim, window_size), jnp.float32),
            "conv_b": 0.1 * jax.random.normal(k[3], (2 * out_channels,), jnp.float32),
            "fc_w": 0.1 * jax.random.normal(k[4], (1, out_channels), jnp.float32),
            "fc_b": 0.1 * jax.random.normal(k[5], (1,), jnp.float32),
        }

    key = jax.random.PRNGKey(0)
    embed_dim, max_len, out_channels, window_size = 8, 64, 16, 4
    kp, key = jax.random.split(key)
    params = make_params(kp, embed_dim, max_len, out_channels, window_size)

    # Test 1: divisible shapes -> single grid step per axis.
    B, L = 2, 64
    kx, key = jax.random.split(key)
    x = jax.random.randint(kx, (B, L), 0, 257, dtype=jnp.int32)
    out = jax.block_until_ready(
        malconv_plus_forward(x, params, window_size=window_size))
    ref = reference_forward(x, params, window_size=window_size)
    assert out.shape == (B,), out.shape
    assert jnp.allclose(out, ref, rtol=2e-2, atol=2e-2), (out, ref)

    # Test 2: L' = 15 with tile_lp=8 -> exercises the masked tail tile (pl.when path).
    B2, L2 = 3, 60
    kx2, key = jax.random.split(key)
    x2 = jax.random.randint(kx2, (B2, L2), 0, 257, dtype=jnp.int32)
    out2 = jax.block_until_ready(
        malconv_plus_forward(x2, params, window_size=window_size, tile_lp=8))
    ref2 = reference_forward(x2, params, window_size=window_size)
    assert out2.shape == (B2,), out2.shape
    assert jnp.allclose(out2, ref2, rtol=2e-2, atol=2e-2), (out2, ref2)

    # Test 3: B=10 with tile_b=8 -> multiple batch blocks + padded batch rows.
    B3, L3 = 10, 64
    kx3, _ = jax.random.split(key)
    x3 = jax.random.randint(kx3, (B3, L3), 0, 257, dtype=jnp.int32)
    out3 = jax.block_until_ready(
        malconv_plus_forward(x3, params, window_size=window_size))
    ref3 = reference_forward(x3, params, window_size=window_size)
    assert out3.shape == (B3,), out3.shape
    assert jnp.allclose(out3, ref3, rtol=2e-2, atol=2e-2), (out3, ref3)

    print("KERNEL_OK")
</pallas_src>

<mosaic_0001>
module attributes {stable_mosaic.version = 11 : i64} {
  func.func @malconv_kernel(%arg0: i32, %arg1: i32, %arg2: memref<2x16x128xbf16, #tpu.memory_space<vmem>>, %arg3: memref<128x256xbf16, #tpu.memory_space<vmem>>, %arg4: memref<1x128xf32, #tpu.memory_space<vmem>>, %arg5: memref<1x128xf32, #tpu.memory_space<vmem>>, %arg6: memref<1x2x128xf32, #tpu.memory_space<vmem>>) attributes {dimension_semantics = [#tpu.dimension_semantics<parallel>, #tpu.dimension_semantics<parallel>], iteration_bounds = array<i64: 1, 1>, scalar_prefetch = 0 : i64, scratch_operands = 0 : i64, tpu.core_type = #tpu.core_type<tc>, window_params = [{transform_indices = @transform_0, window_bounds = array<i64: 2, 16, 128>}, {pipeline_mode = #tpu.pipeline_mode<synchronous>, transform_indices = @transform_1, window_bounds = array<i64: 128, 256>}, {pipeline_mode = #tpu.pipeline_mode<synchronous>, transform_indices = @transform_2, window_bounds = array<i64: 1, 128>}, {pipeline_mode = #tpu.pipeline_mode<synchronous>, transform_indices = @transform_3, window_bounds = array<i64: 1, 128>}, {transform_indices = @transform_4, window_bounds = array<i64: 1, 2, 128>}]} {
    %c0 = arith.constant 0 : index
    %c0_0 = arith.constant 0 : index
    %c0_1 = arith.constant 0 : index
    %0 = vector.load %arg2[%c0, %c0_0, %c0_1] : memref<2x16x128xbf16, #tpu.memory_space<vmem>>, vector<2x16x128xbf16>
    %1 = vector.shape_cast %0 : vector<2x16x128xbf16> to vector<32x128xbf16>
    %c0_2 = arith.constant 0 : index
    %c0_3 = arith.constant 0 : index
    %2 = vector.load %arg3[%c0_2, %c0_3] : memref<128x256xbf16, #tpu.memory_space<vmem>>, vector<128x256xbf16>
    %cst = arith.constant dense<0.000000e+00> : vector<32x256xf32>
    %3 = tpu.matmul %1, %2, %cst {dimension_numbers = #tpu.dot_dimension_numbers<[1], [0], [0], [1], [0, 0, 1, 1], [], []>} : vector<32x128xbf16>, vector<128x256xbf16>, vector<32x256xf32> -> vector<32x256xf32>
    %4 = vector.extract_strided_slice %3 {offsets = [0, 0], sizes = [32, 128], strides = [1, 1]} : vector<32x256xf32> to vector<32x128xf32>
    %c0_4 = arith.constant 0 : index
    %c0_5 = arith.constant 0 : index
    %5 = vector.load %arg4[%c0_4, %c0_5] : memref<1x128xf32, #tpu.memory_space<vmem>>, vector<1x128xf32>
    %6 = vector.broadcast %5 : vector<1x128xf32> to vector<32x128xf32>
    %7 = arith.addf %4, %6 : vector<32x128xf32>
    %8 = vector.extract_strided_slice %3 {offsets = [0, 128], sizes = [32, 128], strides = [1, 1]} : vector<32x256xf32> to vector<32x128xf32>
    %c0_6 = arith.constant 0 : index
    %c0_7 = arith.constant 0 : index
    %9 = vector.load %arg5[%c0_6, %c0_7] : memref<1x128xf32, #tpu.memory_space<vmem>>, vector<1x128xf32>
    %10 = vector.broadcast %9 : vector<1x128xf32> to vector<32x128xf32>
    %11 = arith.addf %8, %10 : vector<32x128xf32>
    %12 = arith.negf %11 : vector<32x128xf32>
    %13 = math.exp %12 : vector<32x128xf32>
    %cst_8 = arith.constant 1.000000e+00 : f32
    %14 = vector.broadcast %cst_8 : f32 to vector<32x128xf32>
    %15 = arith.addf %14, %13 : vector<32x128xf32>
    %16 = arith.divf %14, %15 : vector<32x128xf32>
    %17 = arith.mulf %7, %16 : vector<32x128xf32>
    %18 = vector.shape_cast %17 : vector<32x128xf32> to vector<2x16x128xf32>
    %cst_9 = arith.constant dense<0xFF800000> : vector<2x128xf32>
    %19 = vector.multi_reduction <maximumf>, %18, %cst_9 [1] : vector<2x16x128xf32> to vector<2x128xf32>
    %20 = vector.shape_cast %19 : vector<2x128xf32> to vector<1x2x128xf32>
    %c0_10 = arith.constant 0 : index
    %c0_11 = arith.constant 0 : index
    %c0_12 = arith.constant 0 : index
    %21 = vector.load %arg6[%c0_10, %c0_11, %c0_12] : memref<1x2x128xf32, #tpu.memory_space<vmem>>, vector<1x2x128xf32>
    tpu.vector_store %arg6[%c0_10, %c0_11, %c0_12], %20 {strides = array<i32>} : memref<1x2x128xf32, #tpu.memory_space<vmem>>, vector<1x2x128xf32>,
    return
  }
  func.func @transform_0(%arg0: i32, %arg1: i32) -> (i32, i32, i32) {
    %c0_i32 = arith.constant 0 : i32
    %c0_i32_0 = arith.constant 0 : i32
    return %arg0, %arg1, %c0_i32 : i32, i32, i32
  }
  func.func @transform_1(%arg0: i32, %arg1: i32) -> (i32, i32) {
    %c0_i32 = arith.constant 0 : i32
    %c0_i32_0 = arith.constant 0 : i32
    %c0_i32_1 = arith.constant 0 : i32
    return %c0_i32, %c0_i32_0 : i32, i32
  }
  func.func @transform_2(%arg0: i32, %arg1: i32) -> (i32, i32) {
    %c0_i32 = arith.constant 0 : i32
    %c0_i32_0 = arith.constant 0 : i32
    %c0_i32_1 = arith.constant 0 : i32
    return %c0_i32, %c0_i32_0 : i32, i32
  }
  func.func @transform_3(%arg0: i32, %arg1: i32) -> (i32, i32) {
    %c0_i32 = arith.constant 0 : i32
    %c0_i32_0 = arith.constant 0 : i32
    %c0_i32_1 = arith.constant 0 : i32
    return %c0_i32, %c0_i32_0 : i32, i32
  }
  func.func @transform_4(%arg0: i32, %arg1: i32) -> (i32, i32, i32) {
    %c0_i32 = arith.constant 0 : i32
    %c0_i32_0 = arith.constant 0 : i32
    return %arg1, %arg0, %c0_i32 : i32, i32, i32
  }
}

</mosaic_0001>

<llo_original>
// kernel: malconv_plus_forward.1
$region0: #{malconv_plus_forward.1}
  #allocation0 [shape = 'u32[]', space=smem, size = 0x4, offset = 0x4, fixed_abs, tag = 'smem constant byte address 0x4 - core index']
  #allocation1 [shape = 'u32[144,128]{1,0:T(1,128)}', space=vmem, size = 0x12000, scoped, tag = 'internal scratch']
  %s0 = inlined_call_operand.vmem [shape: bf16[2,16,128], index: 0, kind: input, shape index: {}]
  %s1 = inlined_call_operand.vmem [shape: bf16[128,256], index: 1, kind: input, shape index: {}]
  %s2 = inlined_call_operand.vmem [shape: f32[1,128], index: 2, kind: input, shape index: {}]
  %s3 = inlined_call_operand.vmem [shape: f32[1,128], index: 3, kind: input, shape index: {}]
  %s4 = inlined_call_operand.vmem [shape: f32[1,2,128], index: 4, kind: output, shape index: {}]
  %s5 = sld [smem:[#allocation0]]
  $region26: #{malconv_plus_forward.1} parent=0
    _
  %s7 = ssub.s32 1, %s5
  %s8 = scalar_select 0, %s7, %s5
  // Predicated region
  $region2: #{malconv_plus_forward.1} parent=0 // pred_check
    _
  $region3: #{malconv_plus_forward.1} parent=0 // pred_check_branch
    %10 = sbr.rel (0) target = $region5
  $region4: #{malconv_plus_forward.1} parent=0 // pred_region
    _
  $region5: #{malconv_plus_forward.1} parent=0 // pred_fallthru
    _
  // Predicated region
  $region6: #{malconv_plus_forward.1} parent=0 // pred_check
    _
  $region7: #{malconv_plus_forward.1} parent=0 // pred_check_branch
    %12 = sbr.rel (0) target = $region9
  $region8: #{malconv_plus_forward.1} parent=0 // pred_region
    _
  $region9: #{malconv_plus_forward.1} parent=0 // pred_fallthru
    _
  // Predicated region
  $region10: #{malconv_plus_forward.1} parent=0 // pred_check
    _
  $region11: #{malconv_plus_forward.1} parent=0 // pred_check_branch
    %14 = sbr.rel (0) target = $region13
  $region12: #{malconv_plus_forward.1} parent=0 // pred_region
    _
  $region13: #{malconv_plus_forward.1} parent=0 // pred_fallthru
    _
  // Predicated region
  $region14: #{malconv_plus_forward.1} parent=0 // pred_check
    _
  $region15: #{malconv_plus_forward.1} parent=0 // pred_check_branch
    %16 = sbr.rel (0) target = $region17
  $region16: #{malconv_plus_forward.1} parent=0 // pred_region
    _
  $region17: #{malconv_plus_forward.1} parent=0 // pred_fallthru
    _
  %v18 = vld [vmem:[%s0] sm:$0xf]
  %v19 = vld [vmem:[%s0 + $0x4] sm:$0xf]
  %v20 = vld [vmem:[%s0 + $0x8] sm:$0xf]
  %v21 = vld [vmem:[%s0 + $0xc] sm:$0xf]
  %v22 = vld [vmem:[%s1] sm:$0xff]
  %v23 = vld [vmem:[%s1 + $0x8] sm:$0xff]
  %v24 = vld [vmem:[%s1 + $0x10] sm:$0xff]
  %v25 = vld [vmem:[%s1 + $0x18] sm:$0xff]
  %v26 = vld [vmem:[%s1 + $0x20] sm:$0xff]
  %v27 = vld [vmem:[%s1 + $0x28] sm:$0xff]
  %v28 = vld [vmem:[%s1 + $0x30] sm:$0xff]
  %v29 = vld [vmem:[%s1 + $0x38] sm:$0xff]
  %v30 = vld [vmem:[%s1 + $0x40] sm:$0xff]
  %v31 = vld [vmem:[%s1 + $0x48] sm:$0xff]
  %v32 = vld [vmem:[%s1 + $0x50] sm:$0xff]
  %v33 = vld [vmem:[%s1 + $0x58] sm:$0xff]
  %v34 = vld [vmem:[%s1 + $0x60] sm:$0xff]
  %v35 = vld [vmem:[%s1 + $0x68] sm:$0xff]
  %v36 = vld [vmem:[%s1 + $0x70] sm:$0xff]
  %v37 = vld [vmem:[%s1 + $0x78] sm:$0xff]
  %v42 = vunpack.c.l.b16 %v18
  %v43 = vunpack.c.l.b16 %v19
  %v44 = vunpack.c.l.b16 %v20
  %v45 = vunpack.c.l.b16 %v21
  %v46 = vpack.c.b16 %v43, %v42
  %v47 = vpack.c.b16 %v45, %v44
  %v66 = vunpack.c.l.b16 %v22
  %v67 = vunpack.c.h.b16 %v22
  %v68 = vunpack.c.l.b16 %v23
  %v69 = vunpack.c.h.b16 %v23
  %v70 = vunpack.c.l.b16 %v24
  %v71 = vunpack.c.h.b16 %v24
  %v72 = vunpack.c.l.b16 %v25
  %v73 = vunpack.c.h.b16 %v25
  %v74 = vunpack.c.l.b16 %v26
  %v75 = vunpack.c.h.b16 %v26
  %v76 = vunpack.c.l.b16 %v27
  %v77 = vunpack.c.h.b16 %v27
  %v78 = vunpack.c.l.b16 %v28
  %v79 = vunpack.c.h.b16 %v28
  %v80 = vunpack.c.l.b16 %v29
  %v81 = vunpack.c.h.b16 %v29
  %v82 = vunpack.c.l.b16 %v30
  %v83 = vunpack.c.h.b16 %v30
  %v84 = vunpack.c.l.b16 %v31
  %v85 = vunpack.c.h.b16 %v31
  %v86 = vunpack.c.l.b16 %v32
  %v87 = vunpack.c.h.b16 %v32
  %v88 = vunpack.c.l.b16 %v33
  %v89 = vunpack.c.h.b16 %v33
  %v90 = vunpack.c.l.b16 %v34
  %v91 = vunpack.c.h.b16 %v34
  %v92 = vunpack.c.l.b16 %v35
  %v93 = vunpack.c.h.b16 %v35
  %v94 = vunpack.c.l.b16 %v36
  %v95 = vunpack.c.h.b16 %v36
  %v96 = vunpack.c.l.b16 %v37
  %v97 = vunpack.c.h.b16 %v37
  %v98 = vpack.c.b16 %v68, %v66
  %v99 = vpack.c.b16 %v69, %v67
  %v100 = vpack.c.b16 %v72, %v70
  %v101 = vpack.c.b16 %v73, %v71
  %v102 = vpack.c.b16 %v76, %v74
  %v103 = vpack.c.b16 %v77, %v75
  %v104 = vpack.c.b16 %v80, %v78
  %v105 = vpack.c.b16 %v81, %v79
  %v106 = vpack.c.b16 %v84, %v82
  %v107 = vpack.c.b16 %v85, %v83
  %v108 = vpack.c.b16 %v88, %v86
  %v109 = vpack.c.b16 %v89, %v87
  %v110 = vpack.c.b16 %v92, %v90
  %v111 = vpack.c.b16 %v93, %v91
  %v112 = vpack.c.b16 %v96, %v94
  %v113 = vpack.c.b16 %v97, %v95
  %130 = vmatprep.subr.bf16.mxu0 %v99
  %131 = vmatpush1.bf16.msra.mxu0 %v98
  %132 = vmatprep.subr.bf16.mxu0 %v101
  %133 = vmatpush1.bf16.msra.mxu0 %v100
  %134 = vmatprep.subr.bf16.mxu0 %v103
  %135 = vmatpush1.bf16.msra.mxu0 %v102
  %136 = vmatprep.subr.bf16.mxu0 %v105
  %137 = vmatpush1.bf16.msra.mxu0 %v104
  %138 = vmatprep.subr.bf16.mxu0 %v107
  %139 = vmatpush1.bf16.msra.mxu0 %v106
  %140 = vmatprep.subr.bf16.mxu0 %v109
  %141 = vmatpush1.bf16.msra.mxu0 %v108
  %142 = vmatprep.subr.bf16.mxu0 %v111
  %143 = vmatpush1.bf16.msra.mxu0 %v110
  %144 = vmatprep.subr.bf16.mxu0 %v113
  %145 = vmatpush1.bf16.msra.mxu0 %v112
  %146 = vmatprep.subr.bf16.mxu0 0
  %147 = vmatpush1.bf16.msra.mxu0 0
  %148 = vmatprep.subr.bf16.mxu0 0
  %149 = vmatpush1.bf16.msra.mxu0 0
  %150 = vmatprep.subr.bf16.mxu0 0
  %151 = vmatpush1.bf16.msra.mxu0 0
  %152 = vmatprep.subr.bf16.mxu0 0
  %153 = vmatpush1.bf16.msra.mxu0 0
  %154 = vmatprep.subr.bf16.mxu0 0
  %155 = vmatpush1.bf16.msra.mxu0 0
  %156 = vmatprep.subr.bf16.mxu0 0
  %157 = vmatpush1.bf16.msra.mxu0 0
  %158 = vmatprep.subr.bf16.mxu0 0
  %159 = vmatpush1.bf16.msra.mxu0 0
  %160 = vmatprep.subr.bf16.mxu0 0
  %161 = vmatpush1.bf16.msra.mxu0 0
  %162 = vmatprep.mubr.bf16.mxu0 0
  %163 = vmatmul.mubr.bf16.gmra.mrb[0].mxu0 %v46
  %v164 = vpop.f32.mrb[0].mxu0
  %v165 = vadd.f32 0.0, %v164
  %v166 = vpop.f32.mrb[0].mxu0
  %v167 = vadd.f32 0.0, %v166
  %v168 = vpop.f32.mrb[0].mxu0
  %v169 = vadd.f32 0.0, %v168
  %v170 = vpop.f32.mrb[0].mxu0
  %v171 = vadd.f32 0.0, %v170
  %172 = vmatprep.mubr.bf16.mxu0 0
  %173 = vmatmul.mubr.bf16.gmra.mrb[0].mxu0 %v47
  %v174 = vpop.f32.mrb[0].mxu0
  %v175 = vadd.f32 0.0, %v174
  %v176 = vpop.f32.mrb[0].mxu0
  %v177 = vadd.f32 0.0, %v176
  %v178 = vpop.f32.mrb[0].mxu0
  %v179 = vadd.f32 0.0, %v178
  %v180 = vpop.f32.mrb[0].mxu0
  %v181 = vadd.f32 0.0, %v180
  %182 = vdwg.mxu0
  %v183 = vld [vmem:[%s2] sm:$0x1]
  %v185 = vlaneseq
  %v186 = vshrl.u32 %v185, 7
  %v187 = vsub.s32 0, %v186
  %v188 = vrot.slane %v183, %v187
  %v190 = vadd.f32 %v165, %v188
  %v191 = vadd.f32 %v169, %v188
  %v192 = vadd.f32 %v175, %v188
  %v193 = vadd.f32 %v179, %v188
  %v194 = vld [vmem:[%s3] sm:$0x1]
  %v196 = vlaneseq
  %v197 = vshrl.u32 %v196, 7
  %v198 = vsub.s32 0, %v197
  %v199 = vrot.slane %v194, %v198
  %v201 = vadd.f32 %v167, %v199
  %v202 = vadd.f32 %v171, %v199
  %v203 = vadd.f32 %v177, %v199
  %v204 = vadd.f32 %v181, %v199
  %v205 = vxor.u32 %v201, 2147483648
  %v206 = vxor.u32 %v202, 2147483648
  %v207 = vxor.u32 %v203, 2147483648
  %v208 = vxor.u32 %v204, 2147483648
  %v209 = vmul.f32 %v205, 1.442695
  %v210 = vpow.pop %v209
  %v211 = vmul.f32 %v206, 1.442695
  %v212 = vpow.pop %v211
  %v213 = vmul.f32 %v207, 1.442695
  %v214 = vpow.pop %v213
  %v215 = vmul.f32 %v208, 1.442695
  %v216 = vpow.pop %v215
  %v217 = vadd.f32 %v210, 1.0
  %v218 = vadd.f32 %v212, 1.0
  %v219 = vadd.f32 %v214, 1.0
  %v220 = vadd.f32 %v216, 1.0
  %v221 = vrcp.pop %v217
  %v222 = vmul.f32 1.0, %v221
  %v223 = vrcp.pop %v218
  %v224 = vmul.f32 1.0, %v223
  %v225 = vrcp.pop %v219
  %v226 = vmul.f32 1.0, %v225
  %v227 = vrcp.pop %v220
  %v228 = vmul.f32 1.0, %v227
  %v229 = vmul.f32 %v190, %v222
  %v230 = vmul.f32 %v191, %v224
  %v231 = vmul.f32 %v192, %v226
  %v232 = vmul.f32 %v193, %v228
  %v233 = vmax.f32 %v229, %v230
  %v234 = vrot.slane %v233, 4
  %v235 = vmax.f32 %v233, %v234
  %v236 = vrot.slane %v235, 2
  %v237 = vmax.f32 %v235, %v236
  %v238 = vrot.slane %v237, 1
  %v239 = vmax.f32 %v237, %v238
  %v240 = vmax.f32 %v231, %v232
  %v241 = vrot.slane %v240, 4
  %v242 = vmax.f32 %v240, %v241
  %v243 = vrot.slane %v242, 2
  %v244 = vmax.f32 %v242, %v243
  %v245 = vrot.slane %v244, 1
  %v246 = vmax.f32 %v244, %v245
  %vm249 = vcmask 1041409
  %v250 = vsel %vm249, %v246, %v239
  %252 = vst [vmem:[%s4] sm:$0x3] %v250
  // Predicated region
  $region18: #{malconv_plus_forward.1} parent=0 // pred_check
    _
  $region19: #{malconv_plus_forward.1} parent=0 // pred_check_branch
    %254 = sbr.rel (0) target = $region21
  $region20: #{malconv_plus_forward.1} parent=0 // pred_region
    _
  $region21: #{malconv_plus_forward.1} parent=0 // pred_fallthru
    _
  // Predicated region
  $region22: #{malconv_plus_forward.1} parent=0 // pred_check
    _
  $region23: #{malconv_plus_forward.1} parent=0 // pred_check_branch
    %256 = sbr.rel (0) target = $region25
  $region24: #{malconv_plus_forward.1} parent=0 // pred_region
    _
  $region25: #{malconv_plus_forward.1} parent=0 // pred_fallthru
    _

</llo_original>
